<compile_context>
chip_gen: v5e
topology: v5e:2x2
jax: 0.10.0
libtpu: 0.0.40
codegen_flags: <defaults>
</compile_context>

<pallas_src>
import math

import jax
import jax.numpy as jnp
from jax import lax
from jax.experimental import pallas as pl
from jax.experimental.pallas import tpu as pltpu

# ---------------- static configuration ----------------
B = 2             # batch
SQ = 8            # query sequence length
SK = 8            # key/value sequence length
D = 32            # embedding_d
H = 4             # num_heads
DH = D // H       # head dim
BQ = B * SQ       # flattened query rows
BK = B * SK       # flattened key rows
RES = "sum"       # config.res_user_block
NEG = -1e30       # additive mask value

# lane offsets inside the packed activation slab (BQ, 128) f32
_Q0 = 0
_K0 = D                       # 32
_B0 = 2 * D                   # 64
_F0 = 2 * D + BK              # 80
_M0 = 3 * D + BK              # 112
_ACT_LANES = 128

# lane offsets inside the packed weight slab (D, 288) bf16
_WQK0 = 0
_WVO0 = H * D                 # 128
_WFF0 = 2 * H * D             # 256
_W_LANES = 2 * H * D + D      # 288


def _user_block_kernel(acts_ref, w_ref, o_ref):
    """Single invocation: all batches, all heads, fully fused."""
    # ---- unpack the two slabs (static lane slices, zero extra DMAs) ----
    q    = acts_ref[:, _Q0:_Q0 + D]        # (BQ, D)  f32
    kx   = acts_ref[:, _K0:_K0 + D]        # (BK, D)  f32
    bias = acts_ref[:, _B0:_B0 + BK]       # (BQ, BK) f32: 0 valid / -1e30 masked|cross-batch
    bff  = acts_ref[:, _F0:_F0 + D]        # (BQ, D)  f32, FFN bias pre-broadcast over rows
    qm   = acts_ref[:, _M0:_M0 + 1]        # (BQ, 1)  f32

    qb = q.astype(jnp.bfloat16)
    kb = kx.astype(jnp.bfloat16)

    wqk = w_ref[:, _WQK0:_WQK0 + H * D]    # (D, H*D) bf16: [Wq_h Wk_h^T / sqrt(dh)]_h
    wvo = w_ref[:, _WVO0:_WVO0 + H * D]    # (D, H*D) bf16: [Wv_h Wo_h]_h
    wff = w_ref[:, _WFF0:_WFF0 + D]        # (D, D)   bf16

    # ---- lane-dense batched head projections: 2 full-128-lane MXU matmuls ----
    a_all  = jnp.dot(qb, wqk, preferred_element_type=jnp.float32)   # (BQ, H*D) f32
    vo_all = jnp.dot(kb, wvo, preferred_element_type=jnp.float32)   # (BK, H*D) f32

    # contract dim 1 of both operands: a_h @ kx^T without materializing a transpose
    nt_dims = (((1,), (1,)), ((), ()))
    ctx = jnp.zeros((BQ, D), jnp.float32)
    for h in range(H):                      # static unroll over heads
        a_h  = a_all[:,  h * D:(h + 1) * D].astype(jnp.bfloat16)    # (BQ, D)
        vo_h = vo_all[:, h * D:(h + 1) * D].astype(jnp.bfloat16)    # (BK, D)
        scores = lax.dot_general(a_h, kb, nt_dims,
                                 preferred_element_type=jnp.float32) + bias  # (BQ, BK)
        m = jnp.max(scores, axis=-1, keepdims=True)
        e = jnp.exp(scores - m)
        p = e * pl.reciprocal(jnp.sum(e, axis=-1, keepdims=True), approx=True)
        ctx = ctx + jnp.dot(p.astype(jnp.bfloat16), vo_h,
                            preferred_element_type=jnp.float32)

    # query mask + residual (config.res_user_block == 'sum'), all f32
    s = ctx * qm
    if RES == "sum":
        s = s + q
    elif RES == "mul":
        s = s * q

    # FFN (Linear) + SiLU
    y = jnp.dot(s.astype(jnp.bfloat16), wff, preferred_element_type=jnp.float32) + bff
    o_ref[...] = (y * jax.nn.sigmoid(y)).astype(o_ref.dtype)


def fold_weights(wq, wk, wv, wo, wff):
    """One-time weight folding/packing (hoisted out of the per-call jitted path).

    Folds done in f32, cast to bf16 afterwards (per review)."""
    scale = 1.0 / math.sqrt(DH)
    wq_h = wq.reshape(D, H, DH)
    wk_h = wk.reshape(D, H, DH)
    wv_h = wv.reshape(D, H, DH)
    wo_h = wo.reshape(H, DH, D)
    # Wqk_all[:, h*D:(h+1)*D] = Wq_h @ Wk_h^T / sqrt(dh)   (scale folded in)
    wqk_all = (jnp.einsum("dhe,fhe->dhf", wq_h, wk_h) * scale).reshape(D, H * D)
    # Wvo_all[:, h*D:(h+1)*D] = Wv_h @ Wo_h                (output proj folded in)
    wvo_all = jnp.einsum("dhe,hef->dhf", wv_h, wo_h).reshape(D, H * D)
    w_slab = jnp.concatenate([wqk_all, wvo_all, wff], axis=1).astype(jnp.bfloat16)
    return w_slab                                           # (D, 288) bf16, one DMA


@jax.jit
def user_block(q, k, q_mask, k_mask, w_slab, bff):
    # ---- per-call activation-slab packing: one small XLA fusion, one DMA ----
    q2 = q.reshape(BQ, D).astype(jnp.float32)
    k2 = k.reshape(BK, D).astype(jnp.float32)
    qm = q_mask.astype(jnp.float32).reshape(BQ, 1)

    # block-diagonal (same-batch) AND key-valid -> shared additive bias
    batch_q = jnp.repeat(jnp.arange(B), SQ)
    batch_k = jnp.repeat(jnp.arange(B), SK)
    same = batch_q[:, None] == batch_k[None, :]
    valid = same & (k_mask.reshape(BK) > 0)[None, :]
    bias = jnp.where(valid, 0.0, NEG).astype(jnp.float32)               # (BQ, BK)

    bffb = jnp.broadcast_to(bff.reshape(1, D).astype(jnp.float32), (BQ, D))
    pad = jnp.zeros((BQ, _ACT_LANES - (_M0 + 1)), jnp.float32)
    acts = jnp.concatenate([q2, k2, bias, bffb, qm, pad], axis=1)        # (BQ, 128) f32

    vmem = pl.BlockSpec(memory_space=pltpu.MemorySpace.VMEM)
    out = pl.pallas_call(
        _user_block_kernel,
        out_shape=jax.ShapeDtypeStruct((BQ, D), jnp.float32),
        in_specs=[vmem, vmem],
        out_specs=vmem,
    )(acts, w_slab)
    return out.reshape(B, SQ, D)


def _xavier_uniform(key, fan_in, fan_out, dtype=jnp.float32):
    limit = math.sqrt(6.0 / (fan_in + fan_out))
    return jax.random.uniform(key, (fan_in, fan_out), dtype, -limit, limit)


if __name__ == "__main__":
    root = jax.random.PRNGKey(0)
    keys = jax.random.split(root, 8)

    # deterministic parameter init (xavier_uniform for all projections, zero bias)
    wq = _xavier_uniform(keys[0], D, D)
    wk = _xavier_uniform(keys[1], D, D)
    wv = _xavier_uniform(keys[2], D, D)
    wo = _xavier_uniform(keys[3], D, D)
    wff = _xavier_uniform(keys[4], D, D)     # config.user_FF Linear, xavier per _init_weights
    bff = jnp.zeros((D,), jnp.float32)

    # deterministic inputs
    q = jax.random.normal(keys[5], (B, SQ, D), jnp.float32)
    k = jax.random.normal(keys[6], (B, SK, D), jnp.float32)
    q_mask = jnp.array([[1] * SQ, [1] * (SQ - 2) + [0] * 2], jnp.float32)
    k_mask = jnp.array([[1] * SK, [1] * (SK - 3) + [0] * 3], jnp.float32)

    w_slab = fold_weights(wq, wk, wv, wo, wff)   # hoisted: once per parameter set
    out = user_block(q, k, q_mask, k_mask, w_slab, bff)
    jax.block_until_ready(out)

    # ---- check 1 (tight): plain-JAX twin of the kernel math (same bf16 operands,
    #      exact softmax); validates packing/slicing/fused structure. ----
    def twin(q, k, q_mask, k_mask):
        q2 = q.reshape(BQ, D)
        k2 = k.reshape(BK, D)
        qm = q_mask.reshape(BQ, 1)
        bq = jnp.repeat(jnp.arange(B), SQ)
        bk = jnp.repeat(jnp.arange(B), SK)
        valid = (bq[:, None] == bk[None, :]) & (k_mask.reshape(BK) > 0)[None, :]
        bias = jnp.where(valid, 0.0, NEG)
        wqk = w_slab[:, _WQK0:_WQK0 + H * D]
        wvo = w_slab[:, _WVO0:_WVO0 + H * D]
        wffb = w_slab[:, _WFF0:_WFF0 + D]
        qb = q2.astype(jnp.bfloat16)
        kb = k2.astype(jnp.bfloat16)
        a_all = jnp.dot(qb, wqk, preferred_element_type=jnp.float32)
        vo_all = jnp.dot(kb, wvo, preferred_element_type=jnp.float32)
        ctx = jnp.zeros((BQ, D), jnp.float32)
        for h in range(H):
            a_h = a_all[:, h * D:(h + 1) * D].astype(jnp.bfloat16)
            vo_h = vo_all[:, h * D:(h + 1) * D].astype(jnp.bfloat16)
            sc = jnp.dot(a_h, kb.T, preferred_element_type=jnp.float32) + bias
            p = jax.nn.softmax(sc, axis=-1)
            ctx = ctx + jnp.dot(p.astype(jnp.bfloat16), vo_h,
                                preferred_element_type=jnp.float32)
        s = ctx * qm + q2
        y = jnp.dot(s.astype(jnp.bfloat16), wffb, preferred_element_type=jnp.float32) + bff
        return (y * jax.nn.sigmoid(y)).reshape(B, SQ, D)

    assert jnp.allclose(out, twin(q, k, q_mask, k_mask), atol=1e-2, rtol=1e-2), \
        "kernel mismatch vs bf16 JAX twin"

    # ---- check 2 (loose): faithful f32 module semantics (unfused per-head weights);
    #      remaining gap comes from bf16 matmul operands inside the kernel. ----
    def ref(q, k, qm, km):
        Q = q @ wq; K = k @ wk; V = k @ wv
        Qh = Q.reshape(B, SQ, H, DH); Kh = K.reshape(B, SK, H, DH); Vh = V.reshape(B, SK, H, DH)
        sc = jnp.einsum("bqhd,bkhd->bhqk", Qh, Kh) / math.sqrt(DH)
        sc = jnp.where(km[:, None, None, :] > 0, sc, NEG)
        p = jax.nn.softmax(sc, axis=-1)
        ctx = jnp.einsum("bhqk,bkhd->bqhd", p, Vh).reshape(B, SQ, D)
        s = (ctx @ wo) * qm[:, :, None] + q
        s = s @ wff + bff
        return s * jax.nn.sigmoid(s)

    assert jnp.allclose(out, ref(q, k, q_mask, k_mask), atol=1.5e-1, rtol=5e-2), \
        "kernel deviates from f32 reference beyond bf16 tolerance"

    print("KERNEL_OK")
</pallas_src>

<mosaic_0001>
module attributes {stable_mosaic.version = 11 : i64} {
  func.func @_user_block_kernel(%arg0: memref<16x128xf32, #tpu.memory_space<vmem>>, %arg1: memref<32x288xbf16, #tpu.memory_space<vmem>>, %arg2: memref<16x32xf32, #tpu.memory_space<vmem>>) attributes {dimension_semantics = [], scalar_prefetch = 0 : i64, scratch_operands = 0 : i64, tpu.core_type = #tpu.core_type<tc>} {
    %c0 = arith.constant 0 : index
    %c0_0 = arith.constant 0 : index
    %0 = vector.load %arg0[%c0, %c0_0] : memref<16x128xf32, #tpu.memory_space<vmem>>, vector<16x32xf32>
    %c0_1 = arith.constant 0 : index
    %c32 = arith.constant 32 : index
    %1 = vector.load %arg0[%c0_1, %c32] : memref<16x128xf32, #tpu.memory_space<vmem>>, vector<16x32xf32>
    %c0_2 = arith.constant 0 : index
    %c64 = arith.constant 64 : index
    %2 = vector.load %arg0[%c0_2, %c64] : memref<16x128xf32, #tpu.memory_space<vmem>>, vector<16x16xf32>
    %c0_3 = arith.constant 0 : index
    %c80 = arith.constant 80 : index
    %3 = vector.load %arg0[%c0_3, %c80] : memref<16x128xf32, #tpu.memory_space<vmem>>, vector<16x32xf32>
    %c0_4 = arith.constant 0 : index
    %c112 = arith.constant 112 : index
    %4 = vector.load %arg0[%c0_4, %c112] : memref<16x128xf32, #tpu.memory_space<vmem>>, vector<16x1xf32>
    %5 = arith.truncf %0 : vector<16x32xf32> to vector<16x32xbf16>
    %6 = arith.truncf %1 : vector<16x32xf32> to vector<16x32xbf16>
    %c0_5 = arith.constant 0 : index
    %c0_6 = arith.constant 0 : index
    %7 = vector.load %arg1[%c0_5, %c0_6] : memref<32x288xbf16, #tpu.memory_space<vmem>>, vector<32x128xbf16>
    %c0_7 = arith.constant 0 : index
    %c128 = arith.constant 128 : index
    %8 = vector.load %arg1[%c0_7, %c128] : memref<32x288xbf16, #tpu.memory_space<vmem>>, vector<32x128xbf16>
    %c0_8 = arith.constant 0 : index
    %c256 = arith.constant 256 : index
    %9 = vector.load %arg1[%c0_8, %c256] : memref<32x288xbf16, #tpu.memory_space<vmem>>, vector<32x32xbf16>
    %cst = arith.constant dense<0.000000e+00> : vector<16x128xf32>
    %10 = tpu.matmul %5, %7, %cst {dimension_numbers = #tpu.dot_dimension_numbers<[1], [0], [0], [1], [0, 0, 1, 1], [], []>} : vector<16x32xbf16>, vector<32x128xbf16>, vector<16x128xf32> -> vector<16x128xf32>
    %cst_9 = arith.constant dense<0.000000e+00> : vector<16x128xf32>
    %11 = tpu.matmul %6, %8, %cst_9 {dimension_numbers = #tpu.dot_dimension_numbers<[1], [0], [0], [1], [0, 0, 1, 1], [], []>} : vector<16x32xbf16>, vector<32x128xbf16>, vector<16x128xf32> -> vector<16x128xf32>
    %cst_10 = arith.constant 0.000000e+00 : f32
    %12 = vector.broadcast %cst_10 : f32 to vector<16x32xf32>
    %13 = vector.extract_strided_slice %10 {offsets = [0, 0], sizes = [16, 32], strides = [1, 1]} : vector<16x128xf32> to vector<16x32xf32>
    %14 = arith.truncf %13 : vector<16x32xf32> to vector<16x32xbf16>
    %15 = vector.extract_strided_slice %11 {offsets = [0, 0], sizes = [16, 32], strides = [1, 1]} : vector<16x128xf32> to vector<16x32xf32>
    %16 = arith.truncf %15 : vector<16x32xf32> to vector<16x32xbf16>
    %cst_11 = arith.constant dense<0.000000e+00> : vector<16x16xf32>
    %17 = tpu.matmul %14, %6, %cst_11 {dimension_numbers = #tpu.dot_dimension_numbers<[1], [1], [0], [0], [0, 0, 1, 0], [], []>} : vector<16x32xbf16>, vector<16x32xbf16>, vector<16x16xf32> -> vector<16x16xf32>
    %18 = arith.addf %17, %2 : vector<16x16xf32>
    %cst_12 = arith.constant dense<0xFF800000> : vector<16xf32>
    %19 = vector.multi_reduction <maximumf>, %18, %cst_12 [1] : vector<16x16xf32> to vector<16xf32>
    %20 = vector.shape_cast %19 : vector<16xf32> to vector<16x1xf32>
    %21 = vector.broadcast %20 : vector<16x1xf32> to vector<16x16xf32>
    %22 = arith.subf %18, %21 : vector<16x16xf32>
    %23 = math.exp %22 : vector<16x16xf32>
    %cst_13 = arith.constant dense<0.000000e+00> : vector<16xf32>
    %24 = vector.multi_reduction <add>, %23, %cst_13 [1] : vector<16x16xf32> to vector<16xf32>
    %25 = vector.shape_cast %24 : vector<16xf32> to vector<16x1xf32>
    %26 = tpu.reciprocal %25 {approx = true} : vector<16x1xf32> -> vector<16x1xf32>
    %27 = vector.broadcast %26 : vector<16x1xf32> to vector<16x16xf32>
    %28 = arith.mulf %23, %27 : vector<16x16xf32>
    %29 = arith.truncf %28 : vector<16x16xf32> to vector<16x16xbf16>
    %cst_14 = arith.constant dense<0.000000e+00> : vector<16x32xf32>
    %30 = tpu.matmul %29, %16, %cst_14 {dimension_numbers = #tpu.dot_dimension_numbers<[1], [0], [0], [1], [0, 0, 1, 1], [], []>} : vector<16x16xbf16>, vector<16x32xbf16>, vector<16x32xf32> -> vector<16x32xf32>
    %31 = arith.addf %12, %30 : vector<16x32xf32>
    %32 = vector.extract_strided_slice %10 {offsets = [0, 32], sizes = [16, 32], strides = [1, 1]} : vector<16x128xf32> to vector<16x32xf32>
    %33 = arith.truncf %32 : vector<16x32xf32> to vector<16x32xbf16>
    %34 = vector.extract_strided_slice %11 {offsets = [0, 32], sizes = [16, 32], strides = [1, 1]} : vector<16x128xf32> to vector<16x32xf32>
    %35 = arith.truncf %34 : vector<16x32xf32> to vector<16x32xbf16>
    %cst_15 = arith.constant dense<0.000000e+00> : vector<16x16xf32>
    %36 = tpu.matmul %33, %6, %cst_15 {dimension_numbers = #tpu.dot_dimension_numbers<[1], [1], [0], [0], [0, 0, 1, 0], [], []>} : vector<16x32xbf16>, vector<16x32xbf16>, vector<16x16xf32> -> vector<16x16xf32>
    %37 = arith.addf %36, %2 : vector<16x16xf32>
    %cst_16 = arith.constant dense<0xFF800000> : vector<16xf32>
    %38 = vector.multi_reduction <maximumf>, %37, %cst_16 [1] : vector<16x16xf32> to vector<16xf32>
    %39 = vector.shape_cast %38 : vector<16xf32> to vector<16x1xf32>
    %40 = vector.broadcast %39 : vector<16x1xf32> to vector<16x16xf32>
    %41 = arith.subf %37, %40 : vector<16x16xf32>
    %42 = math.exp %41 : vector<16x16xf32>
    %cst_17 = arith.constant dense<0.000000e+00> : vector<16xf32>
    %43 = vector.multi_reduction <add>, %42, %cst_17 [1] : vector<16x16xf32> to vector<16xf32>
    %44 = vector.shape_cast %43 : vector<16xf32> to vector<16x1xf32>
    %45 = tpu.reciprocal %44 {approx = true} : vector<16x1xf32> -> vector<16x1xf32>
    %46 = vector.broadcast %45 : vector<16x1xf32> to vector<16x16xf32>
    %47 = arith.mulf %42, %46 : vector<16x16xf32>
    %48 = arith.truncf %47 : vector<16x16xf32> to vector<16x16xbf16>
    %cst_18 = arith.constant dense<0.000000e+00> : vector<16x32xf32>
    %49 = tpu.matmul %48, %35, %cst_18 {dimension_numbers = #tpu.dot_dimension_numbers<[1], [0], [0], [1], [0, 0, 1, 1], [], []>} : vector<16x16xbf16>, vector<16x32xbf16>, vector<16x32xf32> -> vector<16x32xf32>
    %50 = arith.addf %31, %49 : vector<16x32xf32>
    %51 = vector.extract_strided_slice %10 {offsets = [0, 64], sizes = [16, 32], strides = [1, 1]} : vector<16x128xf32> to vector<16x32xf32>
    %52 = arith.truncf %51 : vector<16x32xf32> to vector<16x32xbf16>
    %53 = vector.extract_strided_slice %11 {offsets = [0, 64], sizes = [16, 32], strides = [1, 1]} : vector<16x128xf32> to vector<16x32xf32>
    %54 = arith.truncf %53 : vector<16x32xf32> to vector<16x32xbf16>
    %cst_19 = arith.constant dense<0.000000e+00> : vector<16x16xf32>
    %55 = tpu.matmul %52, %6, %cst_19 {dimension_numbers = #tpu.dot_dimension_numbers<[1], [1], [0], [0], [0, 0, 1, 0], [], []>} : vector<16x32xbf16>, vector<16x32xbf16>, vector<16x16xf32> -> vector<16x16xf32>
    %56 = arith.addf %55, %2 : vector<16x16xf32>
    %cst_20 = arith.constant dense<0xFF800000> : vector<16xf32>
    %57 = vector.multi_reduction <maximumf>, %56, %cst_20 [1] : vector<16x16xf32> to vector<16xf32>
    %58 = vector.shape_cast %57 : vector<16xf32> to vector<16x1xf32>
    %59 = vector.broadcast %58 : vector<16x1xf32> to vector<16x16xf32>
    %60 = arith.subf %56, %59 : vector<16x16xf32>
    %61 = math.exp %60 : vector<16x16xf32>
    %cst_21 = arith.constant dense<0.000000e+00> : vector<16xf32>
    %62 = vector.multi_reduction <add>, %61, %cst_21 [1] : vector<16x16xf32> to vector<16xf32>
    %63 = vector.shape_cast %62 : vector<16xf32> to vector<16x1xf32>
    %64 = tpu.reciprocal %63 {approx = true} : vector<16x1xf32> -> vector<16x1xf32>
    %65 = vector.broadcast %64 : vector<16x1xf32> to vector<16x16xf32>
    %66 = arith.mulf %61, %65 : vector<16x16xf32>
    %67 = arith.truncf %66 : vector<16x16xf32> to vector<16x16xbf16>
    %cst_22 = arith.constant dense<0.000000e+00> : vector<16x32xf32>
    %68 = tpu.matmul %67, %54, %cst_22 {dimension_numbers = #tpu.dot_dimension_numbers<[1], [0], [0], [1], [0, 0, 1, 1], [], []>} : vector<16x16xbf16>, vector<16x32xbf16>, vector<16x32xf32> -> vector<16x32xf32>
    %69 = arith.addf %50, %68 : vector<16x32xf32>
    %70 = vector.extract_strided_slice %10 {offsets = [0, 96], sizes = [16, 32], strides = [1, 1]} : vector<16x128xf32> to vector<16x32xf32>
    %71 = arith.truncf %70 : vector<16x32xf32> to vector<16x32xbf16>
    %72 = vector.extract_strided_slice %11 {offsets = [0, 96], sizes = [16, 32], strides = [1, 1]} : vector<16x128xf32> to vector<16x32xf32>
    %73 = arith.truncf %72 : vector<16x32xf32> to vector<16x32xbf16>
    %cst_23 = arith.constant dense<0.000000e+00> : vector<16x16xf32>
    %74 = tpu.matmul %71, %6, %cst_23 {dimension_numbers = #tpu.dot_dimension_numbers<[1], [1], [0], [0], [0, 0, 1, 0], [], []>} : vector<16x32xbf16>, vector<16x32xbf16>, vector<16x16xf32> -> vector<16x16xf32>
    %75 = arith.addf %74, %2 : vector<16x16xf32>
    %cst_24 = arith.constant dense<0xFF800000> : vector<16xf32>
    %76 = vector.multi_reduction <maximumf>, %75, %cst_24 [1] : vector<16x16xf32> to vector<16xf32>
    %77 = vector.shape_cast %76 : vector<16xf32> to vector<16x1xf32>
    %78 = vector.broadcast %77 : vector<16x1xf32> to vector<16x16xf32>
    %79 = arith.subf %75, %78 : vector<16x16xf32>
    %80 = math.exp %79 : vector<16x16xf32>
    %cst_25 = arith.constant dense<0.000000e+00> : vector<16xf32>
    %81 = vector.multi_reduction <add>, %80, %cst_25 [1] : vector<16x16xf32> to vector<16xf32>
    %82 = vector.shape_cast %81 : vector<16xf32> to vector<16x1xf32>
    %83 = tpu.reciprocal %82 {approx = true} : vector<16x1xf32> -> vector<16x1xf32>
    %84 = vector.broadcast %83 : vector<16x1xf32> to vector<16x16xf32>
    %85 = arith.mulf %80, %84 : vector<16x16xf32>
    %86 = arith.truncf %85 : vector<16x16xf32> to vector<16x16xbf16>
    %cst_26 = arith.constant dense<0.000000e+00> : vector<16x32xf32>
    %87 = tpu.matmul %86, %73, %cst_26 {dimension_numbers = #tpu.dot_dimension_numbers<[1], [0], [0], [1], [0, 0, 1, 1], [], []>} : vector<16x16xbf16>, vector<16x32xbf16>, vector<16x32xf32> -> vector<16x32xf32>
    %88 = arith.addf %69, %87 : vector<16x32xf32>
    %89 = vector.broadcast %4 : vector<16x1xf32> to vector<16x32xf32>
    %90 = arith.mulf %88, %89 : vector<16x32xf32>
    %91 = arith.addf %90, %0 : vector<16x32xf32>
    %92 = arith.truncf %91 : vector<16x32xf32> to vector<16x32xbf16>
    %cst_27 = arith.constant dense<0.000000e+00> : vector<16x32xf32>
    %93 = tpu.matmul %92, %9, %cst_27 {dimension_numbers = #tpu.dot_dimension_numbers<[1], [0], [0], [1], [0, 0, 1, 1], [], []>} : vector<16x32xbf16>, vector<32x32xbf16>, vector<16x32xf32> -> vector<16x32xf32>
    %94 = arith.addf %93, %3 : vector<16x32xf32>
    %95 = arith.negf %94 : vector<16x32xf32>
    %96 = math.exp %95 : vector<16x32xf32>
    %cst_28 = arith.constant 1.000000e+00 : f32
    %97 = vector.broadcast %cst_28 : f32 to vector<16x32xf32>
    %98 = arith.addf %97, %96 : vector<16x32xf32>
    %99 = arith.divf %97, %98 : vector<16x32xf32>
    %100 = arith.mulf %94, %99 : vector<16x32xf32>
    %c0_29 = arith.constant 0 : index
    %c0_30 = arith.constant 0 : index
    %101 = vector.load %arg2[%c0_29, %c0_30] : memref<16x32xf32, #tpu.memory_space<vmem>>, vector<16x32xf32>
    tpu.vector_store %arg2[%c0_29, %c0_30], %100 {strides = array<i32>} : memref<16x32xf32, #tpu.memory_space<vmem>>, vector<16x32xf32>,
    return
  }
}

</mosaic_0001>

<llo_original>
// kernel: eq.8
$region0: #{eq.8}
  %s0 = inlined_call_operand.vmem [shape: s32[2,8], index: 0, kind: input, shape index: {}]
  %s1 = inlined_call_operand.vmem [shape: s32[16], index: 1, kind: output, shape index: {}]
  $region1: #{eq.8} parent=0
    #allocation0 [shape = 'u8[4096]{0}', space=vmem, size = 0x1000, scoped, tag = 'scoped mem for output reshape']
    #allocation1 [shape = 'u8[4096]{0}', space=vmem, size = 0x1000, scoped, tag = 'scoped mem for input reshape']
    %s3 = ssub.s32 4, 1
    %v4 = vld [vmem:[%s0] sm:%s3]
    %5 = vst [vmem:[#allocation1] sm:%s3] %v4
    %v6 = vld [vmem:[#allocation1] sm:$0x1]
    %vm7 = vcmask 64512
    %8 = vst.msk [vmem:[#allocation0] sm:$0x1] %vm7, %v6
    %s9 = scalar_lea.vmem [#allocation1], 1
    %v10 = vld [vmem:[%s9] sm:$0x1]
    %11 = vrot.lane.b32.xlu0 %v10, 8
    %v12 = vpop.permute.xlu0 %11
    %vm13 = vcmask 130112
    %14 = vst.msk [vmem:[#allocation0] sm:$0x1] %vm13, %v12
    %s16 = ssub.s32 2, 1
    %v17 = vld [vmem:[#allocation0] sm:%s16]
    %s19 = ssub.s32 2, 1
    %20 = vst [vmem:[%s1] sm:%s19] %v17

// kernel: user_block.1
$region0: #{user_block.1}
  #allocation0 [shape = 'u32[]', space=smem, size = 0x4, offset = 0x4, fixed_abs, tag = 'smem constant byte address 0x4 - core index']
  #allocation1 [shape = 'u32[72,128]{1,0:T(1,128)}', space=vmem, size = 0x9000, scoped, tag = 'internal scratch']
  %s0 = inlined_call_operand.vmem [shape: f32[16,128], index: 0, kind: input, shape index: {}]
  %s1 = inlined_call_operand.vmem [shape: bf16[32,288], index: 1, kind: input, shape index: {}]
  %s2 = inlined_call_operand.hbm [shape: f32[16,32], index: 2, kind: output, shape index: {}]
  %s3 = sld [smem:[#allocation0]]
  $region18: #{user_block.1} parent=0
    _
  %s5 = ssub.s32 1, %s3
  %s6 = scalar_select 0, %s5, %s3
  $region1: #{user_block.1} parent=0
    #allocation2 [shape = 'u8[8192]{0}', space=vmem, size = 0x2000, scoped, tag = 'output window, operand 0, single buffered']
    #allocation3 [shape = 's32[1]{0}', space=sflag, size = 0x4, scoped, tag = 'scoped memory for user_block.1']
    %7 = vsyncpa [#allocation3], 0
    // Predicated region
    $region2: #{user_block.1} parent=1 // pred_check
      _
    $region3: #{user_block.1} parent=1 // pred_check_branch
      %9 = sbr.rel (0) target = $region5
    $region4: #{user_block.1} parent=1 // pred_region
      _
    $region5: #{user_block.1} parent=1 // pred_fallthru
      _
    // Predicated region
    $region6: #{user_block.1} parent=1 // pred_check
      _
    $region7: #{user_block.1} parent=1 // pred_check_branch
      %11 = sbr.rel (0) target = $region9
    $region8: #{user_block.1} parent=1 // pred_region
      _
    $region9: #{user_block.1} parent=1 // pred_fallthru
      _
    %v13 = vld [vmem:[%s0] sm:$0xff]
    %v14 = vld [vmem:[%s0 + $0x8] sm:$0xff]
    %v15 = vpack.c.bf16 %v14, %v13
    %v16 = vld [vmem:[%s1] sm:$0xf]
    %v17 = vld [vmem:[%s1 + $0xc] sm:$0xf]
    %v18 = vld [vmem:[%s1 + $0x18] sm:$0xf]
    %v19 = vld [vmem:[%s1 + $0x24] sm:$0xf]
    %v20 = vld [vmem:[%s1 + $0x4] sm:$0xf]
    %v21 = vld [vmem:[%s1 + $0x10] sm:$0xf]
    %v22 = vld [vmem:[%s1 + $0x1c] sm:$0xf]
    %v23 = vld [vmem:[%s1 + $0x28] sm:$0xf]
    %v24 = vld [vmem:[%s1 + $0x8] sm:$0xf]
    %v25 = vld [vmem:[%s1 + $0x14] sm:$0xf]
    %v26 = vld [vmem:[%s1 + $0x20] sm:$0xf]
    %v27 = vld [vmem:[%s1 + $0x2c] sm:$0xf]
    %v32 = vunpack.c.l.b16 %v16
    %v33 = vunpack.c.l.b16 %v17
    %v34 = vunpack.c.l.b16 %v18
    %v35 = vunpack.c.l.b16 %v19
    %v36 = vpack.c.b16 %v33, %v32
    %v37 = vpack.c.b16 %v35, %v34
    %vm40 = vcmask 261120
    %v42 = vsel %vm40, %v15, 0
    %44 = vmatpush.bf16.msra.mxu0 0
    %45 = vmatpush.bf16.msra.mxu0 0
    %46 = vmatpush.bf16.msra.mxu0 0
    %47 = vmatpush.bf16.msra.mxu0 0
    %48 = vmatpush.bf16.msra.mxu0 0
    %49 = vmatpush.bf16.msra.mxu0 0
    %50 = vmatpush.bf16.msra.mxu0 %v37
    %51 = vmatpush.bf16.msra.mxu0 %v36
    %52 = vmatmul.bf16.gmra.mxu0 %v42
    %v53 = vpop.f32.mrf.mxu0
    %v54 = vadd.f32 0.0, %v53
    %v55 = vpop.f32.mrf.mxu0
    %v56 = vadd.f32 0.0, %v55
    %57 = vdwg.mxu0
    %59 = vrot.lane.b32.xlu0 %v15, 96
    %v60 = vpop.permute.xlu0 %59
    %v65 = vunpack.c.l.b16 %v20
    %v66 = vunpack.c.l.b16 %v21
    %v67 = vunpack.c.l.b16 %v22
    %v68 = vunpack.c.l.b16 %v23
    %v69 = vpack.c.b16 %v66, %v65
    %v70 = vpack.c.b16 %v68, %v67
    %v74 = vsel %vm40, %v60, 0
    %76 = vmatpush.bf16.msra.mxu0 0
    %77 = vmatpush.bf16.msra.mxu0 0
    %78 = vmatpush.bf16.msra.mxu0 0
    %79 = vmatpush.bf16.msra.mxu0 0
    %80 = vmatpush.bf16.msra.mxu0 0
    %81 = vmatpush.bf16.msra.mxu0 0
    %82 = vmatpush.bf16.msra.mxu0 %v70
    %83 = vmatpush.bf16.msra.mxu0 %v69
    %84 = vmatmul.bf16.gmra.mxu0 %v74
    %v85 = vpop.f32.mrf.mxu0
    %v86 = vadd.f32 0.0, %v85
    %v87 = vpop.f32.mrf.mxu0
    %v88 = vadd.f32 0.0, %v87
    %89 = vdwg.mxu0
    %v90 = vpack.c.bf16 %v56, %v54
    %v91 = vpack.c.bf16 %v88, %v86
    %94 = vrot.lane.b32.xlu0 %v13, 64
    %v95 = vpop.permute.xlu0 %94
    %96 = vrot.lane.b32.xlu0 %v14, 64
    %v97 = vpop.permute.xlu0 %96
    %v101 = vsel %vm40, %v90, 0
    %103 = vmatpush.bf16.xpose.msra.mxu0 0
    %104 = vmatpush.bf16.xpose.msra.mxu0 0
    %105 = vmatpush.bf16.xpose.msra.mxu0 0
    %106 = vmatpush.bf16.xpose.msra.mxu0 0
    %107 = vmatpush.bf16.xpose.msra.mxu0 0
    %108 = vmatpush.bf16.xpose.msra.mxu0 0
    %109 = vmatpush.bf16.xpose.msra.mxu0 0
    %110 = vmatpush.bf16.xpose.msra.mxu0 %v74
    %111 = vmatmul.bf16.gmra.mxu0 %v101
    %v112 = vpop.f32.mrf.mxu0
    %v113 = vadd.f32 %v95, %v112
    %v114 = vpop.f32.mrf.mxu0
    %v115 = vadd.f32 %v97, %v114
    %116 = vdwg.mxu0
    %vm117 = vcmask 130048
    %v118 = vsel %vm117, %v113, -inf
    %119 = vmax.xlane.f32.xlu0 %v118
    %v120 = vpop.xlane.xlu0 %119
    %v121 = vsel %vm117, %v115, -inf
    %122 = vmax.xlane.f32.xlu0 %v121
    %v123 = vpop.xlane.xlu0 %122
    %v124 = vsub.f32 %v113, %v120
    %v125 = vsub.f32 %v115, %v123
    %v126 = vmul.f32 %v124, 1.442695
    %v127 = vpow.pop %v126
    %v128 = vmul.f32 %v125, 1.442695
    %v129 = vpow.pop %v128
    %v130 = vsel %vm117, %v127, 0.0
    %131 = vadd.xlane.f32.xlu0 %v130
    %v132 = vpop.xlane.xlu0 %131
    %v133 = vsel %vm117, %v129, 0.0
    %134 = vadd.xlane.f32.xlu0 %v133
    %v135 = vpop.xlane.xlu0 %134
    %v136 = vrcp.pop %v132
    %v137 = vrcp.pop %v135
    %v138 = vmul.f32 %v127, %v136
    %v139 = vmul.f32 %v129, %v137
    %v140 = vpack.c.bf16 %v139, %v138
    %142 = vrot.lane.b32.xlu0 %v90, 96
    %v143 = vpop.permute.xlu0 %142
    %v145 = vsel %vm40, %v143, 0
    %147 = vmatpush.bf16.xpose.msra.mxu0 0
    %148 = vmatpush.bf16.xpose.msra.mxu0 0
    %149 = vmatpush.bf16.xpose.msra.mxu0 0
    %150 = vmatpush.bf16.xpose.msra.mxu0 0
    %151 = vmatpush.bf16.xpose.msra.mxu0 0
    %152 = vmatpush.bf16.xpose.msra.mxu0 0
    %153 = vmatpush.bf16.xpose.msra.mxu0 0
    %154 = vmatpush.bf16.xpose.msra.mxu0 %v74
    %155 = vmatmul.bf16.gmra.mxu0 %v145
    %v156 = vpop.f32.mrf.mxu0
    %v157 = vadd.f32 %v95, %v156
    %v158 = vpop.f32.mrf.mxu0
    %v159 = vadd.f32 %v97, %v158
    %160 = vdwg.mxu0
    %v161 = vsel %vm117, %v157, -inf
    %162 = vmax.xlane.f32.xlu0 %v161
    %v163 = vpop.xlane.xlu0 %162
    %v164 = vsel %vm117, %v159, -inf
    %165 = vmax.xlane.f32.xlu0 %v164
    %v166 = vpop.xlane.xlu0 %165
    %v167 = vsub.f32 %v157, %v163
    %v168 = vsub.f32 %v159, %v166
    %v169 = vmul.f32 %v167, 1.442695
    %v170 = vpow.pop %v169
    %v171 = vmul.f32 %v168, 1.442695
    %v172 = vpow.pop %v171
    %v173 = vsel %vm117, %v170, 0.0
    %174 = vadd.xlane.f32.xlu0 %v173
    %v175 = vpop.xlane.xlu0 %174
    %v176 = vsel %vm117, %v172, 0.0
    %177 = vadd.xlane.f32.xlu0 %v176
    %v178 = vpop.xlane.xlu0 %177
    %v179 = vrcp.pop %v175
    %v180 = vrcp.pop %v178
    %v181 = vmul.f32 %v170, %v179
    %v182 = vmul.f32 %v172, %v180
    %v183 = vpack.c.bf16 %v182, %v181
    %185 = vrot.lane.b32.xlu0 %v91, 96
    %v186 = vpop.permute.xlu0 %185
    %v189 = vsel %vm117, %v183, 0
    %191 = vmatpush.bf16.msra.mxu0 0
    %192 = vmatpush.bf16.msra.mxu0 0
    %193 = vmatpush.bf16.msra.mxu0 0
    %194 = vmatpush.bf16.msra.mxu0 0
    %195 = vmatpush.bf16.msra.mxu0 0
    %196 = vmatpush.bf16.msra.mxu0 0
    %197 = vmatpush.bf16.msra.mxu0 0
    %198 = vmatpush.bf16.msra.mxu0 %v186
    %199 = vmatmul.bf16.gmra.mxu0 %v189
    %v200 = vpop.f32.mrf.mxu0
    %v201 = vadd.f32 0.0, %v200
    %v202 = vpop.f32.mrf.mxu0
    %v203 = vadd.f32 0.0, %v202
    %204 = vdwg.mxu0
    %v206 = vsel %vm117, %v140, 0
    %208 = vmatpush.bf16.msra.mxu0 0
    %209 = vmatpush.bf16.msra.mxu0 0
    %210 = vmatpush.bf16.msra.mxu0 0
    %211 = vmatpush.bf16.msra.mxu0 0
    %212 = vmatpush.bf16.msra.mxu0 0
    %213 = vmatpush.bf16.msra.mxu0 0
    %214 = vmatpush.bf16.msra.mxu0 0
    %215 = vmatpush.bf16.msra.mxu0 %v91
    %216 = vmatmul.bf16.gmra.mxu0 %v206
    %v217 = vpop.f32.mrf.mxu0
    %v218 = vadd.f32 %v201, %v217
    %v219 = vpop.f32.mrf.mxu0
    %v220 = vadd.f32 %v203, %v219
    %221 = vdwg.mxu0
    %222 = vrot.lane.b32.xlu0 %v90, 64
    %v223 = vpop.permute.xlu0 %222
    %v225 = vsel %vm40, %v223, 0
    %227 = vmatpush.bf16.xpose.msra.mxu0 0
    %228 = vmatpush.bf16.xpose.msra.mxu0 0
    %229 = vmatpush.bf16.xpose.msra.mxu0 0
    %230 = vmatpush.bf16.xpose.msra.mxu0 0
    %231 = vmatpush.bf16.xpose.msra.mxu0 0
    %232 = vmatpush.bf16.xpose.msra.mxu0 0
    %233 = vmatpush.bf16.xpose.msra.mxu0 0
    %234 = vmatpush.bf16.xpose.msra.mxu0 %v74
    %235 = vmatmul.bf16.gmra.mxu0 %v225
    %v236 = vpop.f32.mrf.mxu0
    %v237 = vadd.f32 %v95, %v236
    %v238 = vpop.f32.mrf.mxu0
    %v239 = vadd.f32 %v97, %v238
    %240 = vdwg.mxu0
    %v241 = vsel %vm117, %v237, -inf
    %242 = vmax.xlane.f32.xlu0 %v241
    %v243 = vpop.xlane.xlu0 %242
    %v244 = vsel %vm117, %v239, -inf
    %245 = vmax.xlane.f32.xlu0 %v244
    %v246 = vpop.xlane.xlu0 %245
    %v247 = vsub.f32 %v237, %v243
    %v248 = vsub.f32 %v239, %v246
    %v249 = vmul.f32 %v247, 1.442695
    %v250 = vpow.pop %v249
    %v251 = vmul.f32 %v248, 1.442695
    %v252 = vpow.pop %v251
    %v253 = vsel %vm117, %v250, 0.0
    %254 = vadd.xlane.f32.xlu0 %v253
    %v255 = vpop.xlane.xlu0 %254
    %v256 = vsel %vm117, %v252, 0.0
    %257 = vadd.xlane.f32.xlu0 %v256
    %v258 = vpop.xlane.xlu0 %257
    %v259 = vrcp.pop %v255
    %v260 = vrcp.pop %v258
    %v261 = vmul.f32 %v250, %v259
    %v262 = vmul.f32 %v252, %v260
    %v263 = vpack.c.bf16 %v262, %v261
    %264 = vrot.lane.b32.xlu0 %v91, 64
    %v265 = vpop.permute.xlu0 %264
    %v268 = vsel %vm117, %v263, 0
    %270 = vmatpush.bf16.msra.mxu0 0
    %271 = vmatpush.bf16.msra.mxu0 0
    %272 = vmatpush.bf16.msra.mxu0 0
    %273 = vmatpush.bf16.msra.mxu0 0
    %274 = vmatpush.bf16.msra.mxu0 0
    %275 = vmatpush.bf16.msra.mxu0 0
    %276 = vmatpush.bf16.msra.mxu0 0
    %277 = vmatpush.bf16.msra.mxu0 %v265
    %278 = vmatmul.bf16.gmra.mxu0 %v268
    %v279 = vpop.f32.mrf.mxu0
    %v280 = vadd.f32 0.0, %v279
    %v281 = vpop.f32.mrf.mxu0
    %v282 = vadd.f32 0.0, %v281
    %283 = vdwg.mxu0
    %v284 = vadd.f32 %v218, %v280
    %v285 = vadd.f32 %v220, %v282
    %286 = vrot.lane.b32.xlu0 %v90, 32
    %v287 = vpop.permute.xlu0 %286
    %v289 = vsel %vm40, %v287, 0
    %291 = vmatpush.bf16.xpose.msra.mxu0 0
    %292 = vmatpush.bf16.xpose.msra.mxu0 0
    %293 = vmatpush.bf16.xpose.msra.mxu0 0
    %294 = vmatpush.bf16.xpose.msra.mxu0 0
    %295 = vmatpush.bf16.xpose.msra.mxu0 0
    %296 = vmatpush.bf16.xpose.msra.mxu0 0
    %297 = vmatpush.bf16.xpose.msra.mxu0 0
    %298 = vmatpush.bf16.xpose.msra.mxu0 %v74
    %299 = vmatmul.bf16.gmra.mxu0 %v289
    %v300 = vpop.f32.mrf.mxu0
    %v301 = vadd.f32 %v95, %v300
    %v302 = vpop.f32.mrf.mxu0
    %v303 = vadd.f32 %v97, %v302
    %304 = vdwg.mxu0
    %v305 = vsel %vm117, %v301, -inf
    %306 = vmax.xlane.f32.xlu0 %v305
    %v307 = vpop.xlane.xlu0 %306
    %v308 = vsel %vm117, %v303, -inf
    %309 = vmax.xlane.f32.xlu0 %v308
    %v310 = vpop.xlane.xlu0 %309
    %v311 = vsub.f32 %v301, %v307
    %v312 = vsub.f32 %v303, %v310
    %v313 = vmul.f32 %v311, 1.442695
    %v314 = vpow.pop %v313
    %v315 = vmul.f32 %v312, 1.442695
    %v316 = vpow.pop %v315
    %v317 = vsel %vm117, %v314, 0.0
    %318 = vadd.xlane.f32.xlu0 %v317
    %v319 = vpop.xlane.xlu0 %318
    %v320 = vsel %vm117, %v316, 0.0
    %321 = vadd.xlane.f32.xlu0 %v320
    %v322 = vpop.xlane.xlu0 %321
    %v323 = vrcp.pop %v319
    %v324 = vrcp.pop %v322
    %v325 = vmul.f32 %v314, %v323
    %v326 = vmul.f32 %v316, %v324
    %v327 = vpack.c.bf16 %v326, %v325
    %328 = vrot.lane.b32.xlu0 %v91, 32
    %v329 = vpop.permute.xlu0 %328
    %v332 = vsel %vm117, %v327, 0
    %334 = vmatpush.bf16.msra.mxu0 0
    %335 = vmatpush.bf16.msra.mxu0 0
    %336 = vmatpush.bf16.msra.mxu0 0
    %337 = vmatpush.bf16.msra.mxu0 0
    %338 = vmatpush.bf16.msra.mxu0 0
    %339 = vmatpush.bf16.msra.mxu0 0
    %340 = vmatpush.bf16.msra.mxu0 0
    %341 = vmatpush.bf16.msra.mxu0 %v329
    %342 = vmatmul.bf16.gmra.mxu0 %v332
    %v343 = vpop.f32.mrf.mxu0
    %v344 = vadd.f32 0.0, %v343
    %v345 = vpop.f32.mrf.mxu0
    %v346 = vadd.f32 0.0, %v345
    %347 = vdwg.mxu0
    %v348 = vadd.f32 %v284, %v344
    %v349 = vadd.f32 %v285, %v346
    %350 = vset.pattern.permute.xlu0 112
    %351 = vperm.xlu0 %350, %v13
    %v352 = vpop.permute.xlu0 %351
    %354 = vset.pattern.permute.xlu0 112
    %355 = vperm.xlu0 %354, %v14
    %v356 = vpop.permute.xlu0 %355
    %v358 = vmul.f32 %v348, %v352
    %v359 = vmul.f32 %v349, %v356
    %v360 = vadd.f32 %v358, %v13
    %v361 = vadd.f32 %v359, %v14
    %v362 = vpack.c.bf16 %v361, %v360
    %v367 = vunpack.c.l.b16 %v24
    %v368 = vunpack.c.l.b16 %v25
    %v369 = vunpack.c.l.b16 %v26
    %v370 = vunpack.c.l.b16 %v27
    %v371 = vpack.c.b16 %v368, %v367
    %v372 = vpack.c.b16 %v370, %v369
    %375 = vrot.lane.b32.xlu0 %v13, 48
    %v376 = vpop.permute.xlu0 %375
    %377 = vrot.lane.b32.xlu0 %v14, 48
    %v378 = vpop.permute.xlu0 %377
    %v382 = vsel %vm40, %v362, 0
    %384 = vmatpush.bf16.msra.mxu0 0
    %385 = vmatpush.bf16.msra.mxu0 0
    %386 = vmatpush.bf16.msra.mxu0 0
    %387 = vmatpush.bf16.msra.mxu0 0
    %388 = vmatpush.bf16.msra.mxu0 0
    %389 = vmatpush.bf16.msra.mxu0 0
    %390 = vmatpush.bf16.msra.mxu0 %v372
    %391 = vmatpush.bf16.msra.mxu0 %v371
    %392 = vmatmul.bf16.gmra.mxu0 %v382
    %v393 = vpop.f32.mrf.mxu0
    %v394 = vadd.f32 %v376, %v393
    %v395 = vpop.f32.mrf.mxu0
    %v396 = vadd.f32 %v378, %v395
    %397 = vdwg.mxu0
    %v398 = vxor.u32 %v394, 2147483648
    %v399 = vxor.u32 %v396, 2147483648
    %v400 = vmul.f32 %v398, 1.442695
    %v401 = vpow.pop %v400
    %v402 = vmul.f32 %v399, 1.442695
    %v403 = vpow.pop %v402
    %v404 = vadd.f32 %v401, 1.0
    %v405 = vadd.f32 %v403, 1.0
    %v406 = vrcp.pop %v404
    %v407 = vmul.f32 %v404, %v406
    %v408 = vsub.f32 1.0, %v407
    %v409 = vmul.f32 %v406, %v408
    %v410 = vadd.f32 %v406, %v409
    %vm411 = vweird.f32 %v404
    %vm412 = vweird.f32 %v406
    %vm413 = vmor %vm411, %vm412
    %v414 = vsel %vm413, %v406, %v410
    %v415 = vand.u32 2147483647, %v404
    %vm416 = vcmp.eq.f32.partialorder %v415, 8.507059e+37
    %v417 = vand.u32 %v404, 2147483648
    %v418 = vor.u32 1.1754944e-38, %v417
    %v419 = vsel %vm416, %v418, %v414
    %v420 = vmul.f32 1.0, %v419
    %v421 = vrcp.pop %v405
    %v422 = vmul.f32 %v405, %v421
    %v423 = vsub.f32 1.0, %v422
    %v424 = vmul.f32 %v421, %v423
    %v425 = vadd.f32 %v421, %v424
    %vm426 = vweird.f32 %v405
    %vm427 = vweird.f32 %v421
    %vm428 = vmor %vm426, %vm427
    %v429 = vsel %vm428, %v421, %v425
    %v430 = vand.u32 2147483647, %v405
    %vm431 = vcmp.eq.f32.partialorder %v430, 8.507059e+37
    %v432 = vand.u32 %v405, 2147483648
    %v433 = vor.u32 1.1754944e-38, %v432
    %v434 = vsel %vm431, %v433, %v429
    %v435 = vmul.f32 1.0, %v434
    %v436 = vmul.f32 %v394, %v420
    %v437 = vmul.f32 %v396, %v435
    %438 = vst.msk [vmem:[#allocation2] sm:$0xff] %vm40, %v436
    %439 = vst.msk [vmem:[#allocation2 + $0x8] sm:$0xff] %vm40, %v437
    // Predicated region
    $region10: #{user_block.1} parent=1 // pred_check
      _
    $region11: #{user_block.1} parent=1 // pred_check_branch
      %441 = sbr.rel (0) target = $region13
    $region12: #{user_block.1} parent=1 // pred_region
      %443 = vsyncadd [#allocation3], 0
      %s444 = sshll.u32 [#allocation2], 4
      %s445 = int_to_ptr.vmem [resolvable:$true] %s444
      %s446 = sshll.u32 %s2, 4
      %s447 = int_to_ptr.hbm [resolvable:$true] %s446
      %452 = dma.vmem_to_hbm [thread:$0]  %s445, 256, %s447, [#allocation3], 128, 128, 8
    $region13: #{user_block.1} parent=1 // pred_fallthru
      _
    // Predicated region
    $region14: #{user_block.1} parent=1 // pred_check
      _
    $region15: #{user_block.1} parent=1 // pred_check_branch
      %454 = sbr.rel (0) target = $region17
    $region16: #{user_block.1} parent=1 // pred_region
      %456 = dma.done [#allocation3], 256
    $region17: #{user_block.1} parent=1 // pred_fallthru
      _
    %457 = vsyncpa [#allocation3], 1

</llo_original>
